<compile_context>
chip_gen: v7x
topology: tpu7x:2x2x1
jax: 0.10.0
libtpu: 0.0.40
codegen_flags: <defaults>
</compile_context>

<pallas_src>
import functools

import jax
import jax.numpy as jnp
from jax.experimental import pallas as pl
from jax.experimental.pallas import tpu as pltpu


_IGNORE_INDEX = -100  # F.nll_loss default


def _nll_loss_kernel(pred_ref, tgt_ref, loss_ref, sum_ref, cnt_ref,
                     *, ignore_index):
    """One tile of `TM` rows per grid step.

    pred_ref: (TM, C) f32  log-probabilities
    tgt_ref:  (TM, 1) i32  class indices (padded rows carry ignore_index)
    loss_ref: (1, 1)  f32  scalar output (SMEM)
    sum_ref:  (1, 1)  f32  SMEM accumulator: sum of picked log-probs
    cnt_ref:  (1, 1)  f32  SMEM accumulator: number of valid (non-ignored) rows
    """
    step = pl.program_id(0)

    @pl.when(step == 0)
    def _init():
        sum_ref[0, 0] = jnp.float32(0.0)
        cnt_ref[0, 0] = jnp.float32(0.0)

    pred = pred_ref[...].astype(jnp.float32)          # (TM, C)
    tgt = tgt_ref[...]                                # (TM, 1) int32
    tm, c = pred.shape

    # One-hot selection of pred[i, target[i]] via lane-iota compare (VPU),
    # masked by validity so padded / ignore_index rows contribute nothing.
    col = jax.lax.broadcasted_iota(jnp.int32, (tm, c), 1)
    valid = tgt != ignore_index                       # (TM, 1) bool
    onehot = (col == tgt) & valid                     # (TM, C) bool

    sum_ref[0, 0] += jnp.sum(jnp.where(onehot, pred, jnp.float32(0.0)))
    cnt_ref[0, 0] += jnp.sum(valid.astype(jnp.float32))

    @pl.when(step == pl.num_programs(0) - 1)
    def _finalize():
        # mean over valid elements; negate for NLL.
        loss_ref[0, 0] = -(sum_ref[0, 0] / cnt_ref[0, 0])


def nll_loss_pallas(pred, target, trans_feat=None, *,
                    ignore_index=_IGNORE_INDEX, tile_rows=128):
    """F.nll_loss(pred, target) with reduction='mean'.  trans_feat is unused."""
    del trans_feat  # unused by the PyTorch module as well

    pred = jnp.asarray(pred, jnp.float32)
    target = jnp.asarray(target, jnp.int32)
    m, c = pred.shape

    # Pad the row dimension to a multiple of the tile; padded rows get
    # ignore_index so they contribute 0 to both the sum and the count.
    m_pad = ((m + tile_rows - 1) // tile_rows) * tile_rows
    if m_pad != m:
        pred = jnp.pad(pred, ((0, m_pad - m), (0, 0)))
        target = jnp.pad(target, (0, m_pad - m), constant_values=ignore_index)
    target2d = target.reshape(m_pad, 1)

    kernel = functools.partial(_nll_loss_kernel, ignore_index=ignore_index)

    loss = pl.pallas_call(
        kernel,
        out_shape=jax.ShapeDtypeStruct((1, 1), jnp.float32),
        grid_spec=pltpu.PrefetchScalarGridSpec(
            num_scalar_prefetch=0,
            grid=(m_pad // tile_rows,),
            in_specs=[
                pl.BlockSpec((tile_rows, c), lambda i: (i, 0)),
                pl.BlockSpec((tile_rows, 1), lambda i: (i, 0)),
            ],
            out_specs=pl.BlockSpec(memory_space=pltpu.MemorySpace.SMEM),
            scratch_shapes=[
                pltpu.SMEM((1, 1), jnp.float32),   # running sum
                pltpu.SMEM((1, 1), jnp.float32),   # running valid count
            ],
        ),
        compiler_params=pltpu.CompilerParams(
            # single reduction axis (accumulator carried across steps)
            dimension_semantics=("arbitrary",),
            vmem_limit_bytes=16 * 1024 * 1024,
        ),
    )(pred, target2d)

    return loss[0, 0]


def nll_loss_reference(pred, target, ignore_index=_IGNORE_INDEX):
    """Plain-JAX reference matching torch.nn.functional.nll_loss defaults."""
    pred = jnp.asarray(pred, jnp.float32)
    target = jnp.asarray(target, jnp.int32)
    valid = target != ignore_index
    safe_t = jnp.clip(target, 0, pred.shape[1] - 1)
    picked = jnp.take_along_axis(pred, safe_t[:, None], axis=1)[:, 0]
    picked = jnp.where(valid, picked, 0.0)
    return -(picked.sum() / valid.sum().astype(jnp.float32))


if __name__ == "__main__":
    # Small shapes consistent with the module's usage in pointbert_seg:
    # pred = log_softmax logits flattened to (batch*points, num_part_classes).
    M, C = 256, 16

    key = jax.random.PRNGKey(0)
    k_logits, k_target = jax.random.split(key)

    logits = jax.random.normal(k_logits, (M, C), dtype=jnp.float32)
    pred = jax.nn.log_softmax(logits, axis=-1)
    target = jax.random.randint(k_target, (M,), 0, C, dtype=jnp.int32)
    trans_feat = jnp.zeros((2, 64, 64), dtype=jnp.float32)  # unused by the loss

    loss = nll_loss_pallas(pred, target, trans_feat)
    loss = jax.block_until_ready(loss)

    ref = nll_loss_reference(pred, target)
    assert loss.shape == ()
    assert jnp.allclose(loss, ref, atol=1e-5, rtol=1e-5), (loss, ref)

    print("KERNEL_OK")
</pallas_src>

<mosaic_0001>
module attributes {stable_mosaic.version = 11 : i64} {
  func.func @_nll_loss_kernel(%arg0: i32, %arg1: memref<128x16xf32, #tpu.memory_space<vmem>>, %arg2: memref<128x1xi32, #tpu.memory_space<vmem>>, %arg3: memref<1x1xf32, #tpu.memory_space<smem>>, %arg4: memref<1x1xf32, #tpu.memory_space<smem>>, %arg5: memref<1x1xf32, #tpu.memory_space<smem>>) attributes {dimension_semantics = [#tpu.dimension_semantics<arbitrary>], iteration_bounds = array<i64: 2>, scalar_prefetch = 0 : i64, scratch_operands = 2 : i64, tpu.core_type = #tpu.core_type<tc>, window_params = [{transform_indices = @transform_0, window_bounds = array<i64: 128, 16>}, {transform_indices = @transform_1, window_bounds = array<i64: 128, 1>}, {transform_indices = @transform_2, window_bounds = array<i64: 1, 1>}]} {
    %c0_i32 = arith.constant 0 : i32
    %0 = arith.cmpi eq, %arg0, %c0_i32 : i32
    %1 = arith.extui %0 : i1 to i32
    %c0_i32_0 = arith.constant 0 : i32
    %2 = arith.cmpi ne, %1, %c0_i32_0 : i32
    scf.if %2 {
      %cst_15 = arith.constant 0.000000e+00 : f32
      %c0_16 = arith.constant 0 : index
      %c0_17 = arith.constant 0 : index
      %33 = memref.load %arg4[%c0_16, %c0_17] : memref<1x1xf32, #tpu.memory_space<smem>>
      memref.store %cst_15, %arg4[%c0_16, %c0_17] : memref<1x1xf32, #tpu.memory_space<smem>>
      %cst_18 = arith.constant 0.000000e+00 : f32
      %c0_19 = arith.constant 0 : index
      %c0_20 = arith.constant 0 : index
      %34 = memref.load %arg5[%c0_19, %c0_20] : memref<1x1xf32, #tpu.memory_space<smem>>
      memref.store %cst_18, %arg5[%c0_19, %c0_20] : memref<1x1xf32, #tpu.memory_space<smem>>
    } else {
    }
    %c0 = arith.constant 0 : index
    %c0_1 = arith.constant 0 : index
    %3 = vector.load %arg1[%c0, %c0_1] : memref<128x16xf32, #tpu.memory_space<vmem>>, vector<128x16xf32>
    %c0_2 = arith.constant 0 : index
    %c0_3 = arith.constant 0 : index
    %4 = vector.load %arg2[%c0_2, %c0_3] : memref<128x1xi32, #tpu.memory_space<vmem>>, vector<128x1xi32>
    %5 = tpu.iota {dimensions = array<i32: 1>} : vector<128x16xi32>
    %c-100_i32 = arith.constant -100 : i32
    %6 = vector.broadcast %c-100_i32 : i32 to vector<128x1xi32>
    %7 = arith.cmpi ne, %4, %6 : vector<128x1xi32>
    %8 = vector.broadcast %4 : vector<128x1xi32> to vector<128x16xi32>
    %9 = arith.cmpi eq, %5, %8 : vector<128x16xi32>
    %10 = vector.broadcast %7 : vector<128x1xi1> to vector<128x16xi1>
    %11 = arith.andi %9, %10 : vector<128x16xi1>
    %c0_4 = arith.constant 0 : index
    %c0_5 = arith.constant 0 : index
    %12 = memref.load %arg4[%c0_4, %c0_5] : memref<1x1xf32, #tpu.memory_space<smem>>
    %cst = arith.constant 0.000000e+00 : f32
    %13 = vector.broadcast %cst : f32 to vector<128x16xf32>
    %14 = arith.select %11, %3, %13 : vector<128x16xi1>, vector<128x16xf32>
    %15 = vector.shape_cast %14 : vector<128x16xf32> to vector<1x128x16xf32>
    %cst_6 = arith.constant dense<0.000000e+00> : vector<1xf32>
    %16 = vector.multi_reduction <add>, %15, %cst_6 [1, 2] : vector<1x128x16xf32> to vector<1xf32>
    %17 = vector.shape_cast %16 : vector<1xf32> to vector<1x1x1xf32>
    %18 = vector.extract %17[0, 0, 0] : f32 from vector<1x1x1xf32>
    %19 = arith.addf %12, %18 : f32
    %c0_7 = arith.constant 0 : index
    %c0_8 = arith.constant 0 : index
    %20 = memref.load %arg4[%c0_7, %c0_8] : memref<1x1xf32, #tpu.memory_space<smem>>
    memref.store %19, %arg4[%c0_7, %c0_8] : memref<1x1xf32, #tpu.memory_space<smem>>
    %c0_9 = arith.constant 0 : index
    %c0_10 = arith.constant 0 : index
    %21 = memref.load %arg5[%c0_9, %c0_10] : memref<1x1xf32, #tpu.memory_space<smem>>
    %22 = arith.extui %7 : vector<128x1xi1> to vector<128x1xi32>
    %23 = arith.sitofp %22 : vector<128x1xi32> to vector<128x1xf32>
    %24 = vector.shape_cast %23 : vector<128x1xf32> to vector<1x128x1xf32>
    %cst_11 = arith.constant dense<0.000000e+00> : vector<1xf32>
    %25 = vector.multi_reduction <add>, %24, %cst_11 [1, 2] : vector<1x128x1xf32> to vector<1xf32>
    %26 = vector.shape_cast %25 : vector<1xf32> to vector<1x1x1xf32>
    %27 = vector.extract %26[0, 0, 0] : f32 from vector<1x1x1xf32>
    %28 = arith.addf %21, %27 : f32
    %c0_12 = arith.constant 0 : index
    %c0_13 = arith.constant 0 : index
    %29 = memref.load %arg5[%c0_12, %c0_13] : memref<1x1xf32, #tpu.memory_space<smem>>
    memref.store %28, %arg5[%c0_12, %c0_13] : memref<1x1xf32, #tpu.memory_space<smem>>
    %c1_i32 = arith.constant 1 : i32
    %30 = arith.cmpi eq, %arg0, %c1_i32 : i32
    %31 = arith.extui %30 : i1 to i32
    %c0_i32_14 = arith.constant 0 : i32
    %32 = arith.cmpi ne, %31, %c0_i32_14 : i32
    scf.if %32 {
      %c0_15 = arith.constant 0 : index
      %c0_16 = arith.constant 0 : index
      %33 = memref.load %arg4[%c0_15, %c0_16] : memref<1x1xf32, #tpu.memory_space<smem>>
      %c0_17 = arith.constant 0 : index
      %c0_18 = arith.constant 0 : index
      %34 = memref.load %arg5[%c0_17, %c0_18] : memref<1x1xf32, #tpu.memory_space<smem>>
      %35 = arith.divf %33, %34 : f32
      %cst_19 = arith.constant 0.000000e+00 : f32
      %36 = arith.subf %cst_19, %35 : f32
      %c0_20 = arith.constant 0 : index
      %c0_21 = arith.constant 0 : index
      %37 = memref.load %arg3[%c0_20, %c0_21] : memref<1x1xf32, #tpu.memory_space<smem>>
      memref.store %36, %arg3[%c0_20, %c0_21] : memref<1x1xf32, #tpu.memory_space<smem>>
    } else {
    }
    return
  }
  func.func @transform_0(%arg0: i32) -> (i32, i32) {
    %c0_i32 = arith.constant 0 : i32
    %c0_i32_0 = arith.constant 0 : i32
    return %arg0, %c0_i32 : i32, i32
  }
  func.func @transform_1(%arg0: i32) -> (i32, i32) {
    %c0_i32 = arith.constant 0 : i32
    %c0_i32_0 = arith.constant 0 : i32
    return %arg0, %c0_i32 : i32, i32
  }
  func.func @transform_2(%arg0: i32) -> (i32, i32) {
    %c0_i32 = arith.constant 0 : i32
    %c0_i32_0 = arith.constant 0 : i32
    %c0_i32_1 = arith.constant 0 : i32
    return %c0_i32, %c0_i32_0 : i32, i32
  }
}

</mosaic_0001>

<llo_original>
// kernel: tpu_custom_call.1
$region0: #{tpu_custom_call.1}
  #allocation0 [shape = 'u32[]', space=smem, size = 0x4, offset = 0x4, fixed_abs, tag = 'smem constant byte address 0x4 - core index']
  #allocation1 [shape = 'u32[144,128]{1,0:T(1,128)}', space=vmem, size = 0x12000, scoped, tag = 'internal scratch']
  #allocation2 [shape = 'f32[1,1]{1,0:T(1,128)}', space=smem, size = 0x200, scoped, tag = 'scratch operand']
  #allocation3 [shape = 'f32[1,1]{1,0:T(1,128)}', space=smem, size = 0x200, scoped, tag = 'scratch operand']
  %s0 = inlined_call_operand.vmem [shape: f32[256,16], index: 0, kind: input, shape index: {}]
  %s1 = inlined_call_operand.vmem [shape: s32[256,1], index: 1, kind: input, shape index: {}]
  %s2 = inlined_call_operand.hbm [shape: f32[1,1], index: 2, kind: output, shape index: {}]
  %s3 = sld [smem:[#allocation0]]
  $region49: #{tpu_custom_call.1} parent=0
    _
  %s5 = ssub.s32 1, %s3
  %s6 = scalar_select 0, %s5, %s3
  $region1: #{tpu_custom_call.1} parent=0
    #allocation4 [shape = 'u8[512]{0}', space=smem, size = 0x200, scoped, tag = 'output window, operand 0, single buffered']
    #allocation5 [shape = 's32[2]{0}', space=sflag, size = 0x8, scoped, tag = 'scoped memory for tpu_custom_call.1']
    %7 = vsyncpa [#allocation5], 0
    loop: start=0, step=1, limit=4
    $region2: #{tpu_custom_call.1} parent=1 // loop_pre_header
      _
    $region3: #{tpu_custom_call.1} parent=1 // loop_header
      %s9 = sphi 0, %s13
      %p10 = scmp.ge.s32.totalorder %s9, 4
      %s19 = sphi 0, %s21
      %s22 = sphi 0, %s19
      %s23 = sphi 0, %s22
      %s39 = sphi 0, %s23
      %s45 = sphi 0, %s47
      %s48 = sphi 0, %s45
      %s49 = sphi 0, %s48
      %s65 = sphi 0, %s49
      %s69 = sphi 0, %s69
      %s71 = sphi 0, %s69
      %s72 = sphi 0, %s71
      %s86 = sphi 0, %s72
    $region4: #{tpu_custom_call.1} parent=1 // loop_header_branch
      %12 = sbr.rel (%p10) target = $region8
    $region5: #{tpu_custom_call.1} parent=1 // loop_body
      %s14 = ssub.s32 %s9, 1
      %s15 = ssub.s32 %s9, 2
      %s16 = sadd.s32 %s9, 1
      %s17 = ssub.s32 %s9, %s16
      %p18 = scmp.eq.s32.totalorder %s17, 0
      %s20 = sadd.s32 %s19, 1
      %s21 = scalar_select %p18, %s19, %s20
      %p24 = pneg %p18
      %p25 = scmp.eq.s32.totalorder %s9, 1
      %p26 = por %p24, %p25
      %p27 = scmp.ne.s32.totalorder %s19, %s22
      %p28 = scmp.eq.s32.totalorder %s9, 0
      %p29 = por %p27, %p28
      %p30 = scmp.ne.s32.totalorder %s19, %s22
      %p31 = scmp.eq.s32.totalorder %s14, 1
      %p32 = por %p30, %p31
      %p33 = scmp.ne.s32.totalorder %s22, %s23
      %p34 = scmp.eq.s32.totalorder %s14, 0
      %p35 = por %p33, %p34
      %p36 = scmp.ne.s32.totalorder %s22, %s23
      %p37 = scmp.eq.s32.totalorder %s15, 1
      %p38 = por %p36, %p37
      %p40 = scmp.ne.s32.totalorder %s23, %s39
      %p41 = scmp.eq.s32.totalorder %s15, 0
      %p42 = por %p40, %p41
      %s43 = ssub.s32 %s9, %s16
      %p44 = scmp.eq.s32.totalorder %s43, 0
      %s46 = sadd.s32 %s45, 1
      %s47 = scalar_select %p44, %s45, %s46
      %p50 = pneg %p44
      %p51 = scmp.eq.s32.totalorder %s9, 1
      %p52 = por %p50, %p51
      %p53 = scmp.ne.s32.totalorder %s45, %s48
      %p54 = scmp.eq.s32.totalorder %s9, 0
      %p55 = por %p53, %p54
      %p56 = scmp.ne.s32.totalorder %s45, %s48
      %p57 = scmp.eq.s32.totalorder %s14, 1
      %p58 = por %p56, %p57
      %p59 = scmp.ne.s32.totalorder %s48, %s49
      %p60 = scmp.eq.s32.totalorder %s14, 0
      %p61 = por %p59, %p60
      %p62 = scmp.ne.s32.totalorder %s48, %s49
      %p63 = scmp.eq.s32.totalorder %s15, 1
      %p64 = por %p62, %p63
      %p66 = scmp.ne.s32.totalorder %s49, %s65
      %p67 = scmp.eq.s32.totalorder %s15, 0
      %p68 = por %p66, %p67
      %s70 = sadd.s32 %s69, 1
      %p73 = scmp.eq.s32.totalorder %s9, 1
      %p74 = scmp.ne.s32.totalorder %s69, %s71
      %p75 = scmp.eq.s32.totalorder %s9, 0
      %p76 = por %p74, %p75
      %p77 = scmp.ne.s32.totalorder %s69, %s71
      %p78 = scmp.eq.s32.totalorder %s14, 1
      %p79 = por %p77, %p78
      %p80 = scmp.ne.s32.totalorder %s71, %s72
      %p81 = scmp.eq.s32.totalorder %s14, 0
      %p82 = por %p80, %p81
      %p83 = scmp.ne.s32.totalorder %s71, %s72
      %p84 = scmp.eq.s32.totalorder %s15, 1
      %p85 = por %p83, %p84
      %p87 = scmp.ne.s32.totalorder %s72, %s86
      %p88 = scmp.eq.s32.totalorder %s15, 0
      %p89 = por %p87, %p88
      %p90 = scmp.le.s32.totalorder 1, %s9
      %p91 = scmp.lt.s32.totalorder %s9, 3
      %p92 = pnand %p90, %p91
      %p93 = pneg %p92
      // Predicated region
      $region9: #{tpu_custom_call.1} parent=5 // pred_check
        _
      $region10: #{tpu_custom_call.1} parent=5 // pred_check_branch
        %95 = sbr.rel (%p92) target = $region12
      $region11: #{tpu_custom_call.1} parent=5 // pred_region
        %s96 = ssub.s32 %s9, 1
      $region12: #{tpu_custom_call.1} parent=5 // pred_fallthru
        _
      %p97 = scmp.lt.s32.totalorder %s9, 2
      // Predicated region
      $region13: #{tpu_custom_call.1} parent=5 // pred_check
        %p98 = pneg %p97
      $region14: #{tpu_custom_call.1} parent=5 // pred_check_branch
        %100 = sbr.rel (%p98) target = $region16
      $region15: #{tpu_custom_call.1} parent=5 // pred_region
        // Predicated region
        $region17: #{tpu_custom_call.1} parent=15 // pred_check
          %p101 = pneg %p29
        $region18: #{tpu_custom_call.1} parent=15 // pred_check_branch
          %103 = sbr.rel (%p101) target = $region20
        $region19: #{tpu_custom_call.1} parent=15 // pred_region
          %s104 = smul.u32 16, %s9
          %p105 = scmp.lt.s32.totalorder %s104, 31
          %s106 = scalar_select %p105, %s104, 31
          %s107 = smul.addr %s106, 8
          %s108 = scalar_lea.vmem %s0, %s107
          %s109 = smul.u32 16, %s9
        $region20: #{tpu_custom_call.1} parent=15 // pred_fallthru
          _
        // Predicated region
        $region21: #{tpu_custom_call.1} parent=15 // pred_check
          %p110 = pneg %p55
        $region22: #{tpu_custom_call.1} parent=15 // pred_check_branch
          %112 = sbr.rel (%p110) target = $region24
        $region23: #{tpu_custom_call.1} parent=15 // pred_region
          %s113 = smul.u32 16, %s9
          %p114 = scmp.lt.s32.totalorder %s113, 31
          %s115 = scalar_select %p114, %s113, 31
          %s116 = smul.addr %s115, 8
          %s117 = scalar_lea.vmem %s1, %s116
          %s118 = smul.u32 16, %s9
        $region24: #{tpu_custom_call.1} parent=15 // pred_fallthru
          _
      $region16: #{tpu_custom_call.1} parent=5 // pred_fallthru
        _
      %p119 = scmp.le.s32.totalorder 1, %s9
      %p120 = scmp.lt.s32.totalorder %s9, 3
      %p121 = pnand %p119, %p120
      %p122 = pneg %p121
      // Predicated region
      $region25: #{tpu_custom_call.1} parent=5 // pred_check
        _
      $region26: #{tpu_custom_call.1} parent=5 // pred_check_branch
        %124 = sbr.rel (%p121) target = $region28
      $region27: #{tpu_custom_call.1} parent=5 // pred_region
        %s125 = ssub.s32 %s9, 1
        %s126 = smul.u32 16, %s14
        %p127 = scmp.lt.s32.totalorder %s126, 31
        %s128 = scalar_select %p127, %s126, 31
        %s129 = smul.addr %s128, 8
        %s130 = scalar_lea.vmem %s0, %s129
        %p131 = pneg %p35
        %p132 = pneg %p32
        %s133 = smul.u32 16, %s14
        %p134 = scmp.lt.s32.totalorder %s133, 31
        %s135 = scalar_select %p134, %s133, 31
        %s136 = smul.addr %s135, 8
        %s137 = scalar_lea.vmem %s1, %s136
        %p138 = pneg %p61
        %p139 = pneg %p58
        %p140 = pneg %p82
        %p141 = pneg %p79
        %s142 = smul.u32 16, %s14
        %p143 = scmp.lt.s32.totalorder %s142, 31
        %s144 = scalar_select %p143, %s142, 31
        %s145 = smul.addr %s144, 8
        %s146 = scalar_lea.vmem %s0, %s145
        %s147 = smul.u32 16, %s14
        %s148 = smul.u32 16, %s14
        %p149 = scmp.lt.s32.totalorder %s148, 31
        %s150 = scalar_select %p149, %s148, 31
        %s151 = smul.addr %s150, 8
        %s152 = scalar_lea.vmem %s1, %s151
        %s153 = smul.u32 16, %s14
        %p154 = scmp.eq.s32.totalorder %s14, 0
        // Predicated region
        $region29: #{tpu_custom_call.1} parent=27 // pred_check
          %p155 = pneg %p154
        $region30: #{tpu_custom_call.1} parent=27 // pred_check_branch
          %157 = sbr.rel (%p155) target = $region32
        $region31: #{tpu_custom_call.1} parent=27 // pred_region
          %s158 = scalar_lea.smem [#allocation2], 0
          %159 = sst [smem:[%s158]] 0.0
          %s160 = scalar_lea.smem [#allocation3], 0
          %161 = sst [smem:[%s160]] 0.0
        $region32: #{tpu_custom_call.1} parent=27 // pred_fallthru
          _
        %v162 = vld [vmem:[%s146] sm:$0xff]
        %v163 = vld [vmem:[%s146 + $0x8] sm:$0xff]
        %v164 = vld [vmem:[%s146 + $0x10] sm:$0xff]
        %v165 = vld [vmem:[%s146 + $0x18] sm:$0xff]
        %v166 = vld [vmem:[%s146 + $0x20] sm:$0xff]
        %v167 = vld [vmem:[%s146 + $0x28] sm:$0xff]
        %v168 = vld [vmem:[%s146 + $0x30] sm:$0xff]
        %v169 = vld [vmem:[%s146 + $0x38] sm:$0xff]
        %v170 = vld [vmem:[%s146 + $0x40] sm:$0xff]
        %v171 = vld [vmem:[%s146 + $0x48] sm:$0xff]
        %v172 = vld [vmem:[%s146 + $0x50] sm:$0xff]
        %v173 = vld [vmem:[%s146 + $0x58] sm:$0xff]
        %v174 = vld [vmem:[%s146 + $0x60] sm:$0xff]
        %v175 = vld [vmem:[%s146 + $0x68] sm:$0xff]
        %v176 = vld [vmem:[%s146 + $0x70] sm:$0xff]
        %v177 = vld [vmem:[%s146 + $0x78] sm:$0xff]
        %v178 = vld [vmem:[%s152] sm:$0xff]
        %v179 = vld [vmem:[%s152 + $0x8] sm:$0xff]
        %v180 = vld [vmem:[%s152 + $0x10] sm:$0xff]
        %v181 = vld [vmem:[%s152 + $0x18] sm:$0xff]
        %v182 = vld [vmem:[%s152 + $0x20] sm:$0xff]
        %v183 = vld [vmem:[%s152 + $0x28] sm:$0xff]
        %v184 = vld [vmem:[%s152 + $0x30] sm:$0xff]
        %v185 = vld [vmem:[%s152 + $0x38] sm:$0xff]
        %v186 = vld [vmem:[%s152 + $0x40] sm:$0xff]
        %v187 = vld [vmem:[%s152 + $0x48] sm:$0xff]
        %v188 = vld [vmem:[%s152 + $0x50] sm:$0xff]
        %v189 = vld [vmem:[%s152 + $0x58] sm:$0xff]
        %v190 = vld [vmem:[%s152 + $0x60] sm:$0xff]
        %v191 = vld [vmem:[%s152 + $0x68] sm:$0xff]
        %v192 = vld [vmem:[%s152 + $0x70] sm:$0xff]
        %v193 = vld [vmem:[%s152 + $0x78] sm:$0xff]
        %v194 = vlaneseq
        %v195 = vand.u32 %v194, 127
        %vm196 = vcmp.ne.s32.totalorder %v178, 4294967196
        %vm197 = vcmp.ne.s32.totalorder %v179, 4294967196
        %vm198 = vcmp.ne.s32.totalorder %v180, 4294967196
        %vm199 = vcmp.ne.s32.totalorder %v181, 4294967196
        %vm200 = vcmp.ne.s32.totalorder %v182, 4294967196
        %vm201 = vcmp.ne.s32.totalorder %v183, 4294967196
        %vm202 = vcmp.ne.s32.totalorder %v184, 4294967196
        %vm203 = vcmp.ne.s32.totalorder %v185, 4294967196
        %vm204 = vcmp.ne.s32.totalorder %v186, 4294967196
        %vm205 = vcmp.ne.s32.totalorder %v187, 4294967196
        %vm206 = vcmp.ne.s32.totalorder %v188, 4294967196
        %vm207 = vcmp.ne.s32.totalorder %v189, 4294967196
        %vm208 = vcmp.ne.s32.totalorder %v190, 4294967196
        %vm209 = vcmp.ne.s32.totalorder %v191, 4294967196
        %vm210 = vcmp.ne.s32.totalorder %v192, 4294967196
        %vm211 = vcmp.ne.s32.totalorder %v193, 4294967196
        %212 = vset.pattern.permute.xlu0 0
        %213 = vperm.xlu0 %212, %v178
        %v214 = vpop.permute.xlu0 %213
        %215 = vset.pattern.permute.xlu0 0
        %216 = vperm.xlu0 %215, %v179
        %v217 = vpop.permute.xlu0 %216
        %218 = vset.pattern.permute.xlu0 0
        %219 = vperm.xlu0 %218, %v180
        %v220 = vpop.permute.xlu0 %219
        %221 = vset.pattern.permute.xlu0 0
        %222 = vperm.xlu0 %221, %v181
        %v223 = vpop.permute.xlu0 %222
        %224 = vset.pattern.permute.xlu0 0
        %225 = vperm.xlu0 %224, %v182
        %v226 = vpop.permute.xlu0 %225
        %227 = vset.pattern.permute.xlu0 0
        %228 = vperm.xlu0 %227, %v183
        %v229 = vpop.permute.xlu0 %228
        %230 = vset.pattern.permute.xlu0 0
        %231 = vperm.xlu0 %230, %v184
        %v232 = vpop.permute.xlu0 %231
        %233 = vset.pattern.permute.xlu0 0
        %234 = vperm.xlu0 %233, %v185
        %v235 = vpop.permute.xlu0 %234
        %236 = vset.pattern.permute.xlu0 0
        %237 = vperm.xlu0 %236, %v186
        %v238 = vpop.permute.xlu0 %237
        %239 = vset.pattern.permute.xlu0 0
        %240 = vperm.xlu0 %239, %v187
        %v241 = vpop.permute.xlu0 %240
        %242 = vset.pattern.permute.xlu0 0
        %243 = vperm.xlu0 %242, %v188
        %v244 = vpop.permute.xlu0 %243
        %245 = vset.pattern.permute.xlu0 0
        %246 = vperm.xlu0 %245, %v189
        %v247 = vpop.permute.xlu0 %246
        %248 = vset.pattern.permute.xlu0 0
        %249 = vperm.xlu0 %248, %v190
        %v250 = vpop.permute.xlu0 %249
        %251 = vset.pattern.permute.xlu0 0
        %252 = vperm.xlu0 %251, %v191
        %v253 = vpop.permute.xlu0 %252
        %254 = vset.pattern.permute.xlu0 0
        %255 = vperm.xlu0 %254, %v192
        %v256 = vpop.permute.xlu0 %255
        %257 = vset.pattern.permute.xlu0 0
        %258 = vperm.xlu0 %257, %v193
        %v259 = vpop.permute.xlu0 %258
        %vm260 = vcmp.eq.s32.totalorder %v195, %v214
        %vm261 = vcmp.eq.s32.totalorder %v195, %v217
        %vm262 = vcmp.eq.s32.totalorder %v195, %v220
        %vm263 = vcmp.eq.s32.totalorder %v195, %v223
        %vm264 = vcmp.eq.s32.totalorder %v195, %v226
        %vm265 = vcmp.eq.s32.totalorder %v195, %v229
        %vm266 = vcmp.eq.s32.totalorder %v195, %v232
        %vm267 = vcmp.eq.s32.totalorder %v195, %v235
        %vm268 = vcmp.eq.s32.totalorder %v195, %v238
        %vm269 = vcmp.eq.s32.totalorder %v195, %v241
        %vm270 = vcmp.eq.s32.totalorder %v195, %v244
        %vm271 = vcmp.eq.s32.totalorder %v195, %v247
        %vm272 = vcmp.eq.s32.totalorder %v195, %v250
        %vm273 = vcmp.eq.s32.totalorder %v195, %v253
        %vm274 = vcmp.eq.s32.totalorder %v195, %v256
        %vm275 = vcmp.eq.s32.totalorder %v195, %v259
        %v276 = vsel %vm196, 1, 0
        %v277 = vsel %vm197, 1, 0
        %v278 = vsel %vm198, 1, 0
        %v279 = vsel %vm199, 1, 0
        %v280 = vsel %vm200, 1, 0
        %v281 = vsel %vm201, 1, 0
        %v282 = vsel %vm202, 1, 0
        %v283 = vsel %vm203, 1, 0
        %v284 = vsel %vm204, 1, 0
        %v285 = vsel %vm205, 1, 0
        %v286 = vsel %vm206, 1, 0
        %v287 = vsel %vm207, 1, 0
        %v288 = vsel %vm208, 1, 0
        %v289 = vsel %vm209, 1, 0
        %v290 = vsel %vm210, 1, 0
        %v291 = vsel %vm211, 1, 0
        %292 = vset.pattern.permute.xlu0 0
        %293 = vperm.xlu0 %292, %v276
        %v294 = vpop.permute.xlu0 %293
        %295 = vset.pattern.permute.xlu0 0
        %296 = vperm.xlu0 %295, %v277
        %v297 = vpop.permute.xlu0 %296
        %298 = vset.pattern.permute.xlu0 0
        %299 = vperm.xlu0 %298, %v278
        %v300 = vpop.permute.xlu0 %299
        %301 = vset.pattern.permute.xlu0 0
        %302 = vperm.xlu0 %301, %v279
        %v303 = vpop.permute.xlu0 %302
        %304 = vset.pattern.permute.xlu0 0
        %305 = vperm.xlu0 %304, %v280
        %v306 = vpop.permute.xlu0 %305
        %307 = vset.pattern.permute.xlu0 0
        %308 = vperm.xlu0 %307, %v281
        %v309 = vpop.permute.xlu0 %308
        %310 = vset.pattern.permute.xlu0 0
        %311 = vperm.xlu0 %310, %v282
        %v312 = vpop.permute.xlu0 %311
        %313 = vset.pattern.permute.xlu0 0
        %314 = vperm.xlu0 %313, %v283
        %v315 = vpop.permute.xlu0 %314
        %316 = vset.pattern.permute.xlu0 0
        %317 = vperm.xlu0 %316, %v284
        %v318 = vpop.permute.xlu0 %317
        %319 = vset.pattern.permute.xlu0 0
        %320 = vperm.xlu0 %319, %v285
        %v321 = vpop.permute.xlu0 %320
        %322 = vset.pattern.permute.xlu0 0
        %323 = vperm.xlu0 %322, %v286
        %v324 = vpop.permute.xlu0 %323
        %325 = vset.pattern.permute.xlu0 0
        %326 = vperm.xlu0 %325, %v287
        %v327 = vpop.permute.xlu0 %326
        %328 = vset.pattern.permute.xlu0 0
        %329 = vperm.xlu0 %328, %v288
        %v330 = vpop.permute.xlu0 %329
        %331 = vset.pattern.permute.xlu0 0
        %332 = vperm.xlu0 %331, %v289
        %v333 = vpop.permute.xlu0 %332
        %334 = vset.pattern.permute.xlu0 0
        %335 = vperm.xlu0 %334, %v290
        %v336 = vpop.permute.xlu0 %335
        %337 = vset.pattern.permute.xlu0 0
        %338 = vperm.xlu0 %337, %v291
        %v339 = vpop.permute.xlu0 %338
        %vm340 = vcmp.eq.s32.totalorder %v294, 1
        %vm341 = vcmp.eq.s32.totalorder %v297, 1
        %vm342 = vcmp.eq.s32.totalorder %v300, 1
        %vm343 = vcmp.eq.s32.totalorder %v303, 1
        %vm344 = vcmp.eq.s32.totalorder %v306, 1
        %vm345 = vcmp.eq.s32.totalorder %v309, 1
        %vm346 = vcmp.eq.s32.totalorder %v312, 1
        %vm347 = vcmp.eq.s32.totalorder %v315, 1
        %vm348 = vcmp.eq.s32.totalorder %v318, 1
        %vm349 = vcmp.eq.s32.totalorder %v321, 1
        %vm350 = vcmp.eq.s32.totalorder %v324, 1
        %vm351 = vcmp.eq.s32.totalorder %v327, 1
        %vm352 = vcmp.eq.s32.totalorder %v330, 1
        %vm353 = vcmp.eq.s32.totalorder %v333, 1
        %vm354 = vcmp.eq.s32.totalorder %v336, 1
        %vm355 = vcmp.eq.s32.totalorder %v339, 1
        %vm356 = vmand %vm260, %vm340
        %vm357 = vmand %vm261, %vm341
        %vm358 = vmand %vm262, %vm342
        %vm359 = vmand %vm263, %vm343
        %vm360 = vmand %vm264, %vm344
        %vm361 = vmand %vm265, %vm345
        %vm362 = vmand %vm266, %vm346
        %vm363 = vmand %vm267, %vm347
        %vm364 = vmand %vm268, %vm348
        %vm365 = vmand %vm269, %vm349
        %vm366 = vmand %vm270, %vm350
        %vm367 = vmand %vm271, %vm351
        %vm368 = vmand %vm272, %vm352
        %vm369 = vmand %vm273, %vm353
        %vm370 = vmand %vm274, %vm354
        %vm371 = vmand %vm275, %vm355
        %s372 = sld [smem:[#allocation2]]
        %v373 = vsel %vm356, %v162, 0.0
        %v374 = vsel %vm357, %v163, 0.0
        %v375 = vsel %vm358, %v164, 0.0
        %v376 = vsel %vm359, %v165, 0.0
        %v377 = vsel %vm360, %v166, 0.0
        %v378 = vsel %vm361, %v167, 0.0
        %v379 = vsel %vm362, %v168, 0.0
        %v380 = vsel %vm363, %v169, 0.0
        %v381 = vsel %vm364, %v170, 0.0
        %v382 = vsel %vm365, %v171, 0.0
        %v383 = vsel %vm366, %v172, 0.0
        %v384 = vsel %vm367, %v173, 0.0
        %v385 = vsel %vm368, %v174, 0.0
        %v386 = vsel %vm369, %v175, 0.0
        %v387 = vsel %vm370, %v176, 0.0
        %v388 = vsel %vm371, %v177, 0.0
        %vm389 = vcmask 130048
        %v390 = vsel %vm389, %v373, 0.0
        %v391 = vsel %vm389, %v374, 0.0
        %v392 = vadd.f32 %v390, %v391
        %v393 = vsel %vm389, %v375, 0.0
        %v394 = vadd.f32 %v392, %v393
        %v395 = vsel %vm389, %v376, 0.0
        %v396 = vadd.f32 %v394, %v395
        %v397 = vsel %vm389, %v377, 0.0
        %v398 = vadd.f32 %v396, %v397
        %v399 = vsel %vm389, %v378, 0.0
        %v400 = vadd.f32 %v398, %v399
        %v401 = vsel %vm389, %v379, 0.0
        %v402 = vadd.f32 %v400, %v401
        %v403 = vsel %vm389, %v380, 0.0
        %v404 = vadd.f32 %v402, %v403
        %v405 = vsel %vm389, %v381, 0.0
        %v406 = vadd.f32 %v404, %v405
        %v407 = vsel %vm389, %v382, 0.0
        %v408 = vadd.f32 %v406, %v407
        %v409 = vsel %vm389, %v383, 0.0
        %v410 = vadd.f32 %v408, %v409
        %v411 = vsel %vm389, %v384, 0.0
        %v412 = vadd.f32 %v410, %v411
        %v413 = vsel %vm389, %v385, 0.0
        %v414 = vadd.f32 %v412, %v413
        %v415 = vsel %vm389, %v386, 0.0
        %v416 = vadd.f32 %v414, %v415
        %v417 = vsel %vm389, %v387, 0.0
        %v418 = vadd.f32 %v416, %v417
        %v419 = vsel %vm389, %v388, 0.0
        %v420 = vadd.f32 %v418, %v419
        %421 = vadd.xlane.f32.xlu0 %v420
        %v422 = vpop.xlane.xlu0 %421
        %v423 = vrot.slane %v422, 4
        %v424 = vadd.f32 %v422, %v423
        %v425 = vrot.slane %v424, 2
        %v426 = vadd.f32 %v424, %v425
        %v427 = vrot.slane %v426, 1
        %v428 = vadd.f32 %v426, %v427
        %s429 = vtos %v428
        %s430 = sadd.f32 %s372, %s429
        %s431 = scalar_lea.smem [#allocation2], 0
        %432 = sst [smem:[%s431]] %s430
        %s433 = sld [smem:[#allocation3]]
        %v434 = vcvt.s32.f32 %v276
        %v435 = vcvt.s32.f32 %v277
        %v436 = vcvt.s32.f32 %v278
        %v437 = vcvt.s32.f32 %v279
        %v438 = vcvt.s32.f32 %v280
        %v439 = vcvt.s32.f32 %v281
        %v440 = vcvt.s32.f32 %v282
        %v441 = vcvt.s32.f32 %v283
        %v442 = vcvt.s32.f32 %v284
        %v443 = vcvt.s32.f32 %v285
        %v444 = vcvt.s32.f32 %v286
        %v445 = vcvt.s32.f32 %v287
        %v446 = vcvt.s32.f32 %v288
        %v447 = vcvt.s32.f32 %v289
        %v448 = vcvt.s32.f32 %v290
        %v449 = vcvt.s32.f32 %v291
        %vm450 = vcmask 7168
        %v451 = vsel %vm450, %v434, 0.0
        %v452 = vsel %vm450, %v435, 0.0
        %v453 = vadd.f32 %v451, %v452
        %v454 = vsel %vm450, %v436, 0.0
        %v455 = vadd.f32 %v453, %v454
        %v456 = vsel %vm450, %v437, 0.0
        %v457 = vadd.f32 %v455, %v456
        %v458 = vsel %vm450, %v438, 0.0
        %v459 = vadd.f32 %v457, %v458
        %v460 = vsel %vm450, %v439, 0.0
        %v461 = vadd.f32 %v459, %v460
        %v462 = vsel %vm450, %v440, 0.0
        %v463 = vadd.f32 %v461, %v462
        %v464 = vsel %vm450, %v441, 0.0
        %v465 = vadd.f32 %v463, %v464
        %v466 = vsel %vm450, %v442, 0.0
        %v467 = vadd.f32 %v465, %v466
        %v468 = vsel %vm450, %v443, 0.0
        %v469 = vadd.f32 %v467, %v468
        %v470 = vsel %vm450, %v444, 0.0
        %v471 = vadd.f32 %v469, %v470
        %v472 = vsel %vm450, %v445, 0.0
        %v473 = vadd.f32 %v471, %v472
        %v474 = vsel %vm450, %v446, 0.0
        %v475 = vadd.f32 %v473, %v474
        %v476 = vsel %vm450, %v447, 0.0
        %v477 = vadd.f32 %v475, %v476
        %v478 = vsel %vm450, %v448, 0.0
        %v479 = vadd.f32 %v477, %v478
        %v480 = vsel %vm450, %v449, 0.0
        %v481 = vadd.f32 %v479, %v480
        %482 = vadd.xlane.f32.xlu0 %v481
        %v483 = vpop.xlane.xlu0 %482
        %v484 = vrot.slane %v483, 4
        %v485 = vadd.f32 %v483, %v484
        %v486 = vrot.slane %v485, 2
        %v487 = vadd.f32 %v485, %v486
        %v488 = vrot.slane %v487, 1
        %v489 = vadd.f32 %v487, %v488
        %s490 = vtos %v489
        %s491 = sadd.f32 %s433, %s490
        %s492 = scalar_lea.smem [#allocation3], 0
        %493 = sst [smem:[%s492]] %s491
        %p494 = scmp.eq.s32.totalorder %s14, 1
        // Predicated region
        $region33: #{tpu_custom_call.1} parent=27 // pred_check
          %p495 = pneg %p494
        $region34: #{tpu_custom_call.1} parent=27 // pred_check_branch
          %497 = sbr.rel (%p495) target = $region36
        $region35: #{tpu_custom_call.1} parent=27 // pred_region
          %s498 = sld [smem:[#allocation2]]
          %s499 = sld [smem:[#allocation3]]
          %v500 = vstv %s499
          %v501 = vrcp.pop %v500
          %s502 = vtos %v501
          %s503 = smul.f32 %s498, %s502
          %s504 = ssub.f32 0.0, %s503
          %s505 = scalar_lea.smem [#allocation4], 0
          %506 = sst [smem:[%s505]] %s504
        $region36: #{tpu_custom_call.1} parent=27 // pred_fallthru
          _
        // Predicated region
        $region37: #{tpu_custom_call.1} parent=27 // pred_check
          %p507 = pneg %p79
        $region38: #{tpu_custom_call.1} parent=27 // pred_check_branch
          %509 = sbr.rel (%p507) target = $region40
        $region39: #{tpu_custom_call.1} parent=27 // pred_region
          %s511 = ssub.s32 16, 16
          %512 = vsyncadd [#allocation5], %s511
          %515 = dma.smem_to_hbm [#allocation4], 16, %s2, [#allocation5]
        $region40: #{tpu_custom_call.1} parent=27 // pred_fallthru
          _
        // Predicated region
        $region41: #{tpu_custom_call.1} parent=27 // pred_check
          %p516 = pneg %p79
        $region42: #{tpu_custom_call.1} parent=27 // pred_check_branch
          %518 = sbr.rel (%p516) target = $region44
        $region43: #{tpu_custom_call.1} parent=27 // pred_region
          %519 = dma.done [#allocation5], 16
        $region44: #{tpu_custom_call.1} parent=27 // pred_fallthru
          _
        %520 = sfence
      $region28: #{tpu_custom_call.1} parent=5 // pred_fallthru
        _
      %p521 = scmp.le.s32.totalorder 2, %s9
      // Predicated region
      $region45: #{tpu_custom_call.1} parent=5 // pred_check
        %p522 = pneg %p521
      $region46: #{tpu_custom_call.1} parent=5 // pred_check_branch
        %524 = sbr.rel (%p522) target = $region48
      $region47: #{tpu_custom_call.1} parent=5 // pred_region
        %s525 = ssub.s32 %s9, 2
      $region48: #{tpu_custom_call.1} parent=5 // pred_fallthru
        _
    $region6: #{tpu_custom_call.1} parent=1 // loop_footer
      %s13 = sadd.s32 1, %s9
    $region7: #{tpu_custom_call.1} parent=1 // loop_footer_branch
      %8 = sbr.rel target = $region3
    $region8: #{tpu_custom_call.1} parent=1 // loop_exit
      _
    %526 = vsyncpa [#allocation5], 1
    %s527 = scalar_lea.sflag [#allocation5], 1
    %528 = vsyncpa %s527, 1

</llo_original>
